<compile_context>
chip_gen: v6e
topology: v6e:2x2x1
jax: 0.10.0
libtpu: 0.0.40
codegen_flags: <defaults>
</compile_context>

<pallas_src>
import jax
import jax.numpy as jnp
from jax.experimental import pallas as pl
from jax.experimental.pallas import tpu as pltpu


HIDDEN1 = 256
HIDDEN2 = 64
LANE = 128


def _round_up(x, m):
    return (x + m - 1) // m * m


def dqn_multiple_kernel(x_ref, w1_ref, b1_ref, w2_ref, b2_ref, w3_ref, b3_ref, o_ref):
    # x_ref: (TB, 1) int32 state indices for this batch tile.
    x = x_ref[...]
    tb = x.shape[0]
    sp = w1_ref.shape[0]

    # one_hot(x, state_dim) built on the VPU; SP is a multiple of 128 (lane-dense).
    col = jax.lax.broadcasted_iota(jnp.int32, (tb, sp), 1)
    onehot = (col == x).astype(jnp.bfloat16)

    # Linear(state_dim, 256) + ReLU  -- MXU bf16, f32 accumulation.
    h1 = jnp.dot(onehot, w1_ref[...], preferred_element_type=jnp.float32)
    h1 = jnp.maximum(h1 + b1_ref[...], 0.0).astype(jnp.bfloat16)

    # Linear(256, 64 -> 128 padded) + ReLU.
    h2 = jnp.dot(h1, w2_ref[...], preferred_element_type=jnp.float32)
    h2 = jnp.maximum(h2 + b2_ref[...], 0.0).astype(jnp.bfloat16)

    # Linear(64, action_dim -> 128 padded); lane-dense unmasked store.
    o_ref[...] = jnp.dot(h2, w3_ref[...], preferred_element_type=jnp.float32) + b3_ref[...]


def dqn_multiple_forward(x, params, *, block_b=512):
    """x: (B,) integer state indices.  params: f32 weights from init_params."""
    w1, b1 = params["w1"], params["b1"]
    w2, b2 = params["w2"], params["b2"]
    w3, b3 = params["w3"], params["b3"]

    state_dim = w1.shape[0]
    action_dim = w3.shape[1]

    # Lane-dense padded shapes (zero padding keeps results exact).
    sp = _round_up(state_dim, LANE)    # one-hot width / W1 rows
    h2p = _round_up(HIDDEN2, LANE)     # hidden-2 lanes
    ap = _round_up(action_dim, LANE)   # output lanes

    w1p = jnp.zeros((sp, HIDDEN1), jnp.bfloat16).at[:state_dim].set(w1.astype(jnp.bfloat16))
    b1p = b1.astype(jnp.float32).reshape(1, HIDDEN1)
    w2p = jnp.zeros((HIDDEN1, h2p), jnp.bfloat16).at[:, :HIDDEN2].set(w2.astype(jnp.bfloat16))
    b2p = jnp.zeros((1, h2p), jnp.float32).at[:, :HIDDEN2].set(b2.reshape(1, HIDDEN2))
    w3p = jnp.zeros((h2p, ap), jnp.bfloat16).at[:HIDDEN2, :action_dim].set(w3.astype(jnp.bfloat16))
    b3p = jnp.zeros((1, ap), jnp.float32).at[:, :action_dim].set(b3.reshape(1, action_dim))

    b = x.shape[0]
    tb = min(block_b, _round_up(b, 8))       # batch tile, multiple of 8
    b_pad = _round_up(b, tb)
    x2d = jnp.zeros((b_pad, 1), jnp.int32).at[:b, 0].set(x.astype(jnp.int32))

    const = lambda shape: pl.BlockSpec(shape, lambda i: (0, 0))  # resident weights

    out = pl.pallas_call(
        dqn_multiple_kernel,
        out_shape=jax.ShapeDtypeStruct((b_pad, ap), jnp.float32),
        grid=(b_pad // tb,),
        in_specs=[
            pl.BlockSpec((tb, 1), lambda i: (i, 0)),     # batch tile of indices
            const((sp, HIDDEN1)), const((1, HIDDEN1)),   # W1 / b1 (resident)
            const((HIDDEN1, h2p)), const((1, h2p)),      # W2 / b2 (resident)
            const((h2p, ap)), const((1, ap)),            # W3 / b3 (resident)
        ],
        out_specs=pl.BlockSpec((tb, ap), lambda i: (i, 0)),
        compiler_params=pltpu.CompilerParams(
            dimension_semantics=("parallel",),
        ),
    )(x2d, w1p, b1p, w2p, b2p, w3p, b3p)

    return out[:b, :action_dim]


def init_params(key, state_dim, action_dim):
    """Deterministic PyTorch-Linear-style init: U(-1/sqrt(fan_in), 1/sqrt(fan_in))."""
    dims = [(state_dim, HIDDEN1), (HIDDEN1, HIDDEN2), (HIDDEN2, action_dim)]
    params = {}
    for idx, (fan_in, fan_out) in enumerate(dims, start=1):
        key, kw, kb = jax.random.split(key, 3)
        bound = 1.0 / (fan_in ** 0.5)
        params[f"w{idx}"] = jax.random.uniform(
            kw, (fan_in, fan_out), jnp.float32, -bound, bound)
        params[f"b{idx}"] = jax.random.uniform(
            kb, (1, fan_out), jnp.float32, -bound, bound)
    return params


def reference_forward(x, params):
    """Pure-JAX reference with the same bf16-weight / f32-accumulate numerics."""
    state_dim = params["w1"].shape[0]
    w1 = params["w1"].astype(jnp.bfloat16)
    w2 = params["w2"].astype(jnp.bfloat16)
    w3 = params["w3"].astype(jnp.bfloat16)
    onehot = jax.nn.one_hot(x.astype(jnp.int32), state_dim, dtype=jnp.bfloat16)
    h1 = jnp.maximum(
        jnp.dot(onehot, w1, preferred_element_type=jnp.float32) + params["b1"], 0.0
    ).astype(jnp.bfloat16)
    h2 = jnp.maximum(
        jnp.dot(h1, w2, preferred_element_type=jnp.float32) + params["b2"], 0.0
    ).astype(jnp.bfloat16)
    return jnp.dot(h2, w3, preferred_element_type=jnp.float32) + params["b3"]


if __name__ == "__main__":
    state_dim = 32
    action_dim = 8

    key = jax.random.PRNGKey(0)
    kx, kx2, kp = jax.random.split(key, 3)
    params = init_params(kp, state_dim, action_dim)

    # Small single-tile case (matches the module's typical per-step usage).
    batch = 8
    x = jax.random.randint(kx, (batch,), 0, state_dim, dtype=jnp.int32)
    out = jax.block_until_ready(dqn_multiple_forward(x, params))
    ref = reference_forward(x, params)
    assert out.shape == (batch, action_dim)
    assert jnp.allclose(out, ref, atol=1e-3, rtol=1e-3), float(jnp.max(jnp.abs(out - ref)))

    # Multi-tile case to exercise the batch grid + resident weights.
    batch2 = 256
    x2 = jax.random.randint(kx2, (batch2,), 0, state_dim, dtype=jnp.int32)
    out2 = jax.block_until_ready(dqn_multiple_forward(x2, params, block_b=128))
    ref2 = reference_forward(x2, params)
    assert out2.shape == (batch2, action_dim)
    assert jnp.allclose(out2, ref2, atol=1e-3, rtol=1e-3), float(jnp.max(jnp.abs(out2 - ref2)))

    print("KERNEL_OK")
</pallas_src>

<mosaic_0001>
module attributes {stable_mosaic.version = 11 : i64} {
  func.func @dqn_multiple_kernel(%arg0: i32, %arg1: memref<8x1xi32, #tpu.memory_space<vmem>>, %arg2: memref<128x256xbf16, #tpu.memory_space<vmem>>, %arg3: memref<1x256xf32, #tpu.memory_space<vmem>>, %arg4: memref<256x128xbf16, #tpu.memory_space<vmem>>, %arg5: memref<1x128xf32, #tpu.memory_space<vmem>>, %arg6: memref<128x128xbf16, #tpu.memory_space<vmem>>, %arg7: memref<1x128xf32, #tpu.memory_space<vmem>>, %arg8: memref<8x128xf32, #tpu.memory_space<vmem>>) attributes {dimension_semantics = [#tpu.dimension_semantics<parallel>], iteration_bounds = array<i64: 1>, scalar_prefetch = 0 : i64, scratch_operands = 0 : i64, tpu.core_type = #tpu.core_type<tc>, window_params = [{transform_indices = @transform_0, window_bounds = array<i64: 8, 1>}, {pipeline_mode = #tpu.pipeline_mode<synchronous>, transform_indices = @transform_1, window_bounds = array<i64: 128, 256>}, {pipeline_mode = #tpu.pipeline_mode<synchronous>, transform_indices = @transform_2, window_bounds = array<i64: 1, 256>}, {pipeline_mode = #tpu.pipeline_mode<synchronous>, transform_indices = @transform_3, window_bounds = array<i64: 256, 128>}, {pipeline_mode = #tpu.pipeline_mode<synchronous>, transform_indices = @transform_4, window_bounds = array<i64: 1, 128>}, {pipeline_mode = #tpu.pipeline_mode<synchronous>, transform_indices = @transform_5, window_bounds = array<i64: 128, 128>}, {pipeline_mode = #tpu.pipeline_mode<synchronous>, transform_indices = @transform_6, window_bounds = array<i64: 1, 128>}, {transform_indices = @transform_7, window_bounds = array<i64: 8, 128>}]} {
    %c0 = arith.constant 0 : index
    %c0_0 = arith.constant 0 : index
    %0 = vector.load %arg1[%c0, %c0_0] : memref<8x1xi32, #tpu.memory_space<vmem>>, vector<8x1xi32>
    %1 = tpu.iota {dimensions = array<i32: 1>} : vector<8x128xi32>
    %2 = vector.broadcast %0 : vector<8x1xi32> to vector<8x128xi32>
    %3 = arith.cmpi eq, %1, %2 : vector<8x128xi32>
    %4 = arith.extui %3 : vector<8x128xi1> to vector<8x128xi32>
    %5 = arith.sitofp %4 : vector<8x128xi32> to vector<8x128xf32>
    %6 = arith.truncf %5 : vector<8x128xf32> to vector<8x128xbf16>
    %c0_1 = arith.constant 0 : index
    %c0_2 = arith.constant 0 : index
    %7 = vector.load %arg2[%c0_1, %c0_2] : memref<128x256xbf16, #tpu.memory_space<vmem>>, vector<128x256xbf16>
    %cst = arith.constant dense<0.000000e+00> : vector<8x256xf32>
    %8 = tpu.matmul %6, %7, %cst {dimension_numbers = #tpu.dot_dimension_numbers<[1], [0], [0], [1], [0, 0, 1, 1], [], []>} : vector<8x128xbf16>, vector<128x256xbf16>, vector<8x256xf32> -> vector<8x256xf32>
    %c0_3 = arith.constant 0 : index
    %c0_4 = arith.constant 0 : index
    %9 = vector.load %arg3[%c0_3, %c0_4] : memref<1x256xf32, #tpu.memory_space<vmem>>, vector<1x256xf32>
    %10 = vector.broadcast %9 : vector<1x256xf32> to vector<8x256xf32>
    %11 = arith.addf %8, %10 : vector<8x256xf32>
    %cst_5 = arith.constant 0.000000e+00 : f32
    %12 = vector.broadcast %cst_5 : f32 to vector<8x256xf32>
    %13 = arith.maximumf %11, %12 : vector<8x256xf32>
    %14 = arith.truncf %13 : vector<8x256xf32> to vector<8x256xbf16>
    %c0_6 = arith.constant 0 : index
    %c0_7 = arith.constant 0 : index
    %15 = vector.load %arg4[%c0_6, %c0_7] : memref<256x128xbf16, #tpu.memory_space<vmem>>, vector<256x128xbf16>
    %cst_8 = arith.constant dense<0.000000e+00> : vector<8x128xf32>
    %16 = tpu.matmul %14, %15, %cst_8 {dimension_numbers = #tpu.dot_dimension_numbers<[1], [0], [0], [1], [0, 0, 1, 1], [], []>} : vector<8x256xbf16>, vector<256x128xbf16>, vector<8x128xf32> -> vector<8x128xf32>
    %c0_9 = arith.constant 0 : index
    %c0_10 = arith.constant 0 : index
    %17 = vector.load %arg5[%c0_9, %c0_10] : memref<1x128xf32, #tpu.memory_space<vmem>>, vector<1x128xf32>
    %18 = vector.broadcast %17 : vector<1x128xf32> to vector<8x128xf32>
    %19 = arith.addf %16, %18 : vector<8x128xf32>
    %cst_11 = arith.constant 0.000000e+00 : f32
    %20 = vector.broadcast %cst_11 : f32 to vector<8x128xf32>
    %21 = arith.maximumf %19, %20 : vector<8x128xf32>
    %22 = arith.truncf %21 : vector<8x128xf32> to vector<8x128xbf16>
    %c0_12 = arith.constant 0 : index
    %c0_13 = arith.constant 0 : index
    %23 = vector.load %arg6[%c0_12, %c0_13] : memref<128x128xbf16, #tpu.memory_space<vmem>>, vector<128x128xbf16>
    %cst_14 = arith.constant dense<0.000000e+00> : vector<8x128xf32>
    %24 = tpu.matmul %22, %23, %cst_14 {dimension_numbers = #tpu.dot_dimension_numbers<[1], [0], [0], [1], [0, 0, 1, 1], [], []>} : vector<8x128xbf16>, vector<128x128xbf16>, vector<8x128xf32> -> vector<8x128xf32>
    %c0_15 = arith.constant 0 : index
    %c0_16 = arith.constant 0 : index
    %25 = vector.load %arg7[%c0_15, %c0_16] : memref<1x128xf32, #tpu.memory_space<vmem>>, vector<1x128xf32>
    %26 = vector.broadcast %25 : vector<1x128xf32> to vector<8x128xf32>
    %27 = arith.addf %24, %26 : vector<8x128xf32>
    %c0_17 = arith.constant 0 : index
    %c0_18 = arith.constant 0 : index
    %28 = vector.load %arg8[%c0_17, %c0_18] : memref<8x128xf32, #tpu.memory_space<vmem>>, vector<8x128xf32>
    tpu.vector_store %arg8[%c0_17, %c0_18], %27 {strides = array<i32>} : memref<8x128xf32, #tpu.memory_space<vmem>>, vector<8x128xf32>,
    return
  }
  func.func @transform_0(%arg0: i32) -> (i32, i32) {
    %c0_i32 = arith.constant 0 : i32
    %c0_i32_0 = arith.constant 0 : i32
    return %arg0, %c0_i32 : i32, i32
  }
  func.func @transform_1(%arg0: i32) -> (i32, i32) {
    %c0_i32 = arith.constant 0 : i32
    %c0_i32_0 = arith.constant 0 : i32
    %c0_i32_1 = arith.constant 0 : i32
    return %c0_i32, %c0_i32_0 : i32, i32
  }
  func.func @transform_2(%arg0: i32) -> (i32, i32) {
    %c0_i32 = arith.constant 0 : i32
    %c0_i32_0 = arith.constant 0 : i32
    %c0_i32_1 = arith.constant 0 : i32
    return %c0_i32, %c0_i32_0 : i32, i32
  }
  func.func @transform_3(%arg0: i32) -> (i32, i32) {
    %c0_i32 = arith.constant 0 : i32
    %c0_i32_0 = arith.constant 0 : i32
    %c0_i32_1 = arith.constant 0 : i32
    return %c0_i32, %c0_i32_0 : i32, i32
  }
  func.func @transform_4(%arg0: i32) -> (i32, i32) {
    %c0_i32 = arith.constant 0 : i32
    %c0_i32_0 = arith.constant 0 : i32
    %c0_i32_1 = arith.constant 0 : i32
    return %c0_i32, %c0_i32_0 : i32, i32
  }
  func.func @transform_5(%arg0: i32) -> (i32, i32) {
    %c0_i32 = arith.constant 0 : i32
    %c0_i32_0 = arith.constant 0 : i32
    %c0_i32_1 = arith.constant 0 : i32
    return %c0_i32, %c0_i32_0 : i32, i32
  }
  func.func @transform_6(%arg0: i32) -> (i32, i32) {
    %c0_i32 = arith.constant 0 : i32
    %c0_i32_0 = arith.constant 0 : i32
    %c0_i32_1 = arith.constant 0 : i32
    return %c0_i32, %c0_i32_0 : i32, i32
  }
  func.func @transform_7(%arg0: i32) -> (i32, i32) {
    %c0_i32 = arith.constant 0 : i32
    %c0_i32_0 = arith.constant 0 : i32
    return %arg0, %c0_i32 : i32, i32
  }
}

</mosaic_0001>

<llo_original>
// kernel: tpu_custom_call.1
$region0: #{tpu_custom_call.1}
  #allocation0 [shape = 'u32[]', space=smem, size = 0x4, offset = 0x4, fixed_abs, tag = 'smem constant byte address 0x4 - core index']
  #allocation1 [shape = 'u32[144,128]{1,0:T(1,128)}', space=vmem, size = 0x12000, scoped, tag = 'internal scratch']
  %s0 = inlined_call_operand.vmem [shape: s32[8,1], index: 0, kind: input, shape index: {}]
  %s1 = inlined_call_operand.hbm [shape: bf16[128,256], index: 1, kind: input, shape index: {}]
  %s2 = inlined_call_operand.vmem [shape: f32[1,256], index: 2, kind: input, shape index: {}]
  %s3 = inlined_call_operand.hbm [shape: bf16[256,128], index: 3, kind: input, shape index: {}]
  %s4 = inlined_call_operand.vmem [shape: f32[1,128], index: 4, kind: input, shape index: {}]
  %s5 = inlined_call_operand.hbm [shape: bf16[128,128], index: 5, kind: input, shape index: {}]
  %s6 = inlined_call_operand.vmem [shape: f32[1,128], index: 6, kind: input, shape index: {}]
  %s7 = inlined_call_operand.hbm [shape: f32[8,128], index: 7, kind: output, shape index: {}]
  %s8 = sld [smem:[#allocation0]]
  $region50: #{tpu_custom_call.1} parent=0
    _
  %s10 = ssub.s32 1, %s8
  %s11 = scalar_select 0, %s10, %s8
  $region1: #{tpu_custom_call.1} parent=0
    #allocation2 [shape = 'u8[65536]{0}', space=vmem, size = 0x10000, scoped, tag = 'input window, operand 1, single buffered']
    #allocation3 [shape = 's32[1]{0}', space=sflag, size = 0x4, scoped, tag = 'scoped memory for tpu_custom_call.1']
    #allocation4 [shape = 's32[1]{0}', space=sflag, size = 0x4, scoped, tag = 'scoped memory for tpu_custom_call.1']
    #allocation5 [shape = 'u8[65536]{0}', space=vmem, size = 0x10000, scoped, tag = 'input window, operand 3, single buffered']
    #allocation6 [shape = 's32[1]{0}', space=sflag, size = 0x4, scoped, tag = 'scoped memory for tpu_custom_call.1']
    #allocation7 [shape = 'u8[32768]{0}', space=vmem, size = 0x8000, scoped, tag = 'input window, operand 5, single buffered']
    #allocation8 [shape = 'u8[4096]{0}', space=vmem, size = 0x1000, scoped, tag = 'output window, operand 0, single buffered']
    %12 = vsyncpa [#allocation3], 0
    %13 = vsyncpa [#allocation6], 0
    %14 = vsyncpa [#allocation4], 0
    // Predicated region
    $region2: #{tpu_custom_call.1} parent=1 // pred_check
      _
    $region3: #{tpu_custom_call.1} parent=1 // pred_check_branch
      %16 = sbr.rel (0) target = $region5
    $region4: #{tpu_custom_call.1} parent=1 // pred_region
      _
    $region5: #{tpu_custom_call.1} parent=1 // pred_fallthru
      _
    // Predicated region
    $region6: #{tpu_custom_call.1} parent=1 // pred_check
      _
    $region7: #{tpu_custom_call.1} parent=1 // pred_check_branch
      %18 = sbr.rel (0) target = $region9
    $region8: #{tpu_custom_call.1} parent=1 // pred_region
      %s20 = ssub.s32 2048, 2048
      %21 = vsyncadd [#allocation3], %s20
      %s22 = sshll.u32 [#allocation2], 4
      %s23 = int_to_ptr.vmem [resolvable:$true] %s22
      %28 = dma.hbm_to_vmem [thread:$0]  %s1, 2048, %s23, [#allocation3], 128, 128, 8
    $region9: #{tpu_custom_call.1} parent=1 // pred_fallthru
      _
    // Predicated region
    $region10: #{tpu_custom_call.1} parent=1 // pred_check
      _
    $region11: #{tpu_custom_call.1} parent=1 // pred_check_branch
      %30 = sbr.rel (0) target = $region13
    $region12: #{tpu_custom_call.1} parent=1 // pred_region
      _
    $region13: #{tpu_custom_call.1} parent=1 // pred_fallthru
      _
    // Predicated region
    $region14: #{tpu_custom_call.1} parent=1 // pred_check
      _
    $region15: #{tpu_custom_call.1} parent=1 // pred_check_branch
      %32 = sbr.rel (0) target = $region17
    $region16: #{tpu_custom_call.1} parent=1 // pred_region
      %s34 = ssub.s32 2048, 2048
      %35 = vsyncadd [#allocation6], %s34
      %s36 = sshll.u32 [#allocation5], 4
      %s37 = int_to_ptr.vmem [resolvable:$true] %s36
      %42 = dma.hbm_to_vmem [thread:$0]  %s3, 2048, %s37, [#allocation6], 64, 64, 4
    $region17: #{tpu_custom_call.1} parent=1 // pred_fallthru
      _
    // Predicated region
    $region18: #{tpu_custom_call.1} parent=1 // pred_check
      _
    $region19: #{tpu_custom_call.1} parent=1 // pred_check_branch
      %44 = sbr.rel (0) target = $region21
    $region20: #{tpu_custom_call.1} parent=1 // pred_region
      _
    $region21: #{tpu_custom_call.1} parent=1 // pred_fallthru
      _
    // Predicated region
    $region22: #{tpu_custom_call.1} parent=1 // pred_check
      _
    $region23: #{tpu_custom_call.1} parent=1 // pred_check_branch
      %46 = sbr.rel (0) target = $region25
    $region24: #{tpu_custom_call.1} parent=1 // pred_region
      %s48 = ssub.s32 1024, 1024
      %49 = vsyncadd [#allocation6], %s48
      %s50 = sshll.u32 [#allocation7], 4
      %s51 = int_to_ptr.vmem [resolvable:$true] %s50
      %56 = dma.hbm_to_vmem [thread:$0]  %s5, 1024, %s51, [#allocation6], 64, 64, 4
    $region25: #{tpu_custom_call.1} parent=1 // pred_fallthru
      _
    // Predicated region
    $region26: #{tpu_custom_call.1} parent=1 // pred_check
      _
    $region27: #{tpu_custom_call.1} parent=1 // pred_check_branch
      %58 = sbr.rel (0) target = $region29
    $region28: #{tpu_custom_call.1} parent=1 // pred_region
      _
    $region29: #{tpu_custom_call.1} parent=1 // pred_fallthru
      _
    // Predicated region
    $region30: #{tpu_custom_call.1} parent=1 // pred_check
      _
    $region31: #{tpu_custom_call.1} parent=1 // pred_check_branch
      %60 = sbr.rel (0) target = $region33
    $region32: #{tpu_custom_call.1} parent=1 // pred_region
      %61 = dma.done [#allocation3], 2048
    $region33: #{tpu_custom_call.1} parent=1 // pred_fallthru
      _
    // Predicated region
    $region34: #{tpu_custom_call.1} parent=1 // pred_check
      _
    $region35: #{tpu_custom_call.1} parent=1 // pred_check_branch
      %63 = sbr.rel (0) target = $region37
    $region36: #{tpu_custom_call.1} parent=1 // pred_region
      %64 = dma.done [#allocation6], 2048
    $region37: #{tpu_custom_call.1} parent=1 // pred_fallthru
      _
    // Predicated region
    $region38: #{tpu_custom_call.1} parent=1 // pred_check
      _
    $region39: #{tpu_custom_call.1} parent=1 // pred_check_branch
      %66 = sbr.rel (0) target = $region41
    $region40: #{tpu_custom_call.1} parent=1 // pred_region
      %67 = dma.done [#allocation6], 1024
    $region41: #{tpu_custom_call.1} parent=1 // pred_fallthru
      _
    %v69 = vld [vmem:[%s0] sm:$0xff]
    %v70 = vlaneseq
    %v71 = vand.u32 %v70, 127
    %72 = vset.pattern.permute.xlu0 0
    %73 = vperm.xlu0 %72, %v69
    %v74 = vpop.permute.xlu0 %73
    %vm75 = vcmp.eq.s32.totalorder %v71, %v74
    %v76 = vsel %vm75, 1, 0
    %v77 = vcvt.s32.f32 %v76
    %v78 = vpack.c.bf16 %v77, %v77
    %v79 = vld [vmem:[#allocation2] sm:$0xff]
    %v80 = vld [vmem:[#allocation2 + $0x8] sm:$0xff]
    %v81 = vld [vmem:[#allocation2 + $0x10] sm:$0xff]
    %v82 = vld [vmem:[#allocation2 + $0x18] sm:$0xff]
    %v83 = vld [vmem:[#allocation2 + $0x20] sm:$0xff]
    %v84 = vld [vmem:[#allocation2 + $0x28] sm:$0xff]
    %v85 = vld [vmem:[#allocation2 + $0x30] sm:$0xff]
    %v86 = vld [vmem:[#allocation2 + $0x38] sm:$0xff]
    %v87 = vld [vmem:[#allocation2 + $0x40] sm:$0xff]
    %v88 = vld [vmem:[#allocation2 + $0x48] sm:$0xff]
    %v89 = vld [vmem:[#allocation2 + $0x50] sm:$0xff]
    %v90 = vld [vmem:[#allocation2 + $0x58] sm:$0xff]
    %v91 = vld [vmem:[#allocation2 + $0x60] sm:$0xff]
    %v92 = vld [vmem:[#allocation2 + $0x68] sm:$0xff]
    %v93 = vld [vmem:[#allocation2 + $0x70] sm:$0xff]
    %v94 = vld [vmem:[#allocation2 + $0x78] sm:$0xff]
    %v95 = vld [vmem:[%s2] sm:$0x3]
    %v97 = vlaneseq
    %v98 = vshrl.u32 %v97, 7
    %v99 = vsub.s32 0, %v98
    %v100 = vrot.slane %v95, %v99
    %v101 = vlaneseq
    %v102 = vshrl.u32 %v101, 7
    %v103 = vsub.s32 1, %v102
    %v104 = vrot.slane %v95, %v103
    %v123 = vunpack.c.l.b16 %v79
    %v124 = vunpack.c.h.b16 %v79
    %v125 = vunpack.c.l.b16 %v80
    %v126 = vunpack.c.h.b16 %v80
    %v127 = vunpack.c.l.b16 %v81
    %v128 = vunpack.c.h.b16 %v81
    %v129 = vunpack.c.l.b16 %v82
    %v130 = vunpack.c.h.b16 %v82
    %v131 = vunpack.c.l.b16 %v83
    %v132 = vunpack.c.h.b16 %v83
    %v133 = vunpack.c.l.b16 %v84
    %v134 = vunpack.c.h.b16 %v84
    %v135 = vunpack.c.l.b16 %v85
    %v136 = vunpack.c.h.b16 %v85
    %v137 = vunpack.c.l.b16 %v86
    %v138 = vunpack.c.h.b16 %v86
    %v139 = vunpack.c.l.b16 %v87
    %v140 = vunpack.c.h.b16 %v87
    %v141 = vunpack.c.l.b16 %v88
    %v142 = vunpack.c.h.b16 %v88
    %v143 = vunpack.c.l.b16 %v89
    %v144 = vunpack.c.h.b16 %v89
    %v145 = vunpack.c.l.b16 %v90
    %v146 = vunpack.c.h.b16 %v90
    %v147 = vunpack.c.l.b16 %v91
    %v148 = vunpack.c.h.b16 %v91
    %v149 = vunpack.c.l.b16 %v92
    %v150 = vunpack.c.h.b16 %v92
    %v151 = vunpack.c.l.b16 %v93
    %v152 = vunpack.c.h.b16 %v93
    %v153 = vunpack.c.l.b16 %v94
    %v154 = vunpack.c.h.b16 %v94
    %v155 = vpack.c.b16 %v125, %v123
    %v156 = vpack.c.b16 %v126, %v124
    %v157 = vpack.c.b16 %v129, %v127
    %v158 = vpack.c.b16 %v130, %v128
    %v159 = vpack.c.b16 %v133, %v131
    %v160 = vpack.c.b16 %v134, %v132
    %v161 = vpack.c.b16 %v137, %v135
    %v162 = vpack.c.b16 %v138, %v136
    %v163 = vpack.c.b16 %v141, %v139
    %v164 = vpack.c.b16 %v142, %v140
    %v165 = vpack.c.b16 %v145, %v143
    %v166 = vpack.c.b16 %v146, %v144
    %v167 = vpack.c.b16 %v149, %v147
    %v168 = vpack.c.b16 %v150, %v148
    %v169 = vpack.c.b16 %v153, %v151
    %v170 = vpack.c.b16 %v154, %v152
    %187 = vmatprep.subr.bf16.mxu0 %v170
    %188 = vmatpush1.bf16.msra.mxu0 %v169
    %189 = vmatprep.subr.bf16.mxu0 %v168
    %190 = vmatpush1.bf16.msra.mxu0 %v167
    %191 = vmatprep.subr.bf16.mxu0 %v166
    %192 = vmatpush1.bf16.msra.mxu0 %v165
    %193 = vmatprep.subr.bf16.mxu0 %v164
    %194 = vmatpush1.bf16.msra.mxu0 %v163
    %195 = vmatprep.subr.bf16.mxu0 %v162
    %196 = vmatpush1.bf16.msra.mxu0 %v161
    %197 = vmatprep.subr.bf16.mxu0 %v160
    %198 = vmatpush1.bf16.msra.mxu0 %v159
    %199 = vmatprep.subr.bf16.mxu0 %v158
    %200 = vmatpush1.bf16.msra.mxu0 %v157
    %201 = vmatprep.subr.bf16.mxu0 %v156
    %202 = vmatpush1.bf16.msra.mxu0 %v155
    %203 = vmatprep.subr.bf16.mxu0 0
    %204 = vmatpush2.bf16.msra.mxu0 0
    %205 = vmatprep.subr.bf16.mxu0 0
    %206 = vmatpush2.bf16.msra.mxu0 0
    %207 = vmatprep.subr.bf16.mxu0 0
    %208 = vmatpush2.bf16.msra.mxu0 0
    %209 = vmatprep.subr.bf16.mxu0 0
    %210 = vmatpush2.bf16.msra.mxu0 0
    %211 = vmatprep.subr.bf16.mxu0 0
    %212 = vmatpush2.bf16.msra.mxu0 0
    %213 = vmatprep.subr.bf16.mxu0 0
    %214 = vmatpush2.bf16.msra.mxu0 0
    %215 = vmatprep.subr.bf16.mxu0 0
    %216 = vmatpush2.bf16.msra.mxu0 0
    %217 = vmatprep.subr.bf16.mxu0 0
    %218 = vmatpush2.bf16.msra.mxu0 0
    %219 = vmatprep.mubr.bf16.mxu0 0
    %220 = vmatmul.mubr.bf16.gmra.mxu0 %v78
    %v221 = vpop.f32.mrf.mxu0
    %v222 = vadd.f32 %v100, %v221
    %v223 = vpop.f32.mrf.mxu0
    %v224 = vadd.f32 %v104, %v223
    %v225 = vpop.f32.mrf.mxu0
    %v226 = vpop.f32.mrf.mxu0
    %227 = vdwg.mxu0
    %v228 = vmax.f32 %v222, 0.0
    %v229 = vmax.f32 %v224, 0.0
    %v230 = vpack.c.bf16 %v228, %v228
    %v231 = vpack.c.bf16 %v229, %v229
    %v232 = vld [vmem:[#allocation5] sm:$0xf]
    %v233 = vld [vmem:[#allocation5 + $0x4] sm:$0xf]
    %v234 = vld [vmem:[#allocation5 + $0x8] sm:$0xf]
    %v235 = vld [vmem:[#allocation5 + $0xc] sm:$0xf]
    %v236 = vld [vmem:[#allocation5 + $0x10] sm:$0xf]
    %v237 = vld [vmem:[#allocation5 + $0x14] sm:$0xf]
    %v238 = vld [vmem:[#allocation5 + $0x18] sm:$0xf]
    %v239 = vld [vmem:[#allocation5 + $0x1c] sm:$0xf]
    %v240 = vld [vmem:[#allocation5 + $0x20] sm:$0xf]
    %v241 = vld [vmem:[#allocation5 + $0x24] sm:$0xf]
    %v242 = vld [vmem:[#allocation5 + $0x28] sm:$0xf]
    %v243 = vld [vmem:[#allocation5 + $0x2c] sm:$0xf]
    %v244 = vld [vmem:[#allocation5 + $0x30] sm:$0xf]
    %v245 = vld [vmem:[#allocation5 + $0x34] sm:$0xf]
    %v246 = vld [vmem:[#allocation5 + $0x38] sm:$0xf]
    %v247 = vld [vmem:[#allocation5 + $0x3c] sm:$0xf]
    %v248 = vld [vmem:[#allocation5 + $0x40] sm:$0xf]
    %v249 = vld [vmem:[#allocation5 + $0x44] sm:$0xf]
    %v250 = vld [vmem:[#allocation5 + $0x48] sm:$0xf]
    %v251 = vld [vmem:[#allocation5 + $0x4c] sm:$0xf]
    %v252 = vld [vmem:[#allocation5 + $0x50] sm:$0xf]
    %v253 = vld [vmem:[#allocation5 + $0x54] sm:$0xf]
    %v254 = vld [vmem:[#allocation5 + $0x58] sm:$0xf]
    %v255 = vld [vmem:[#allocation5 + $0x5c] sm:$0xf]
    %v256 = vld [vmem:[#allocation5 + $0x60] sm:$0xf]
    %v257 = vld [vmem:[#allocation5 + $0x64] sm:$0xf]
    %v258 = vld [vmem:[#allocation5 + $0x68] sm:$0xf]
    %v259 = vld [vmem:[#allocation5 + $0x6c] sm:$0xf]
    %v260 = vld [vmem:[#allocation5 + $0x70] sm:$0xf]
    %v261 = vld [vmem:[#allocation5 + $0x74] sm:$0xf]
    %v262 = vld [vmem:[#allocation5 + $0x78] sm:$0xf]
    %v263 = vld [vmem:[#allocation5 + $0x7c] sm:$0xf]
    %v264 = vld [vmem:[%s4] sm:$0x1]
    %v266 = vlaneseq
    %v267 = vshrl.u32 %v266, 7
    %v268 = vsub.s32 0, %v267
    %v269 = vrot.slane %v264, %v268
    %v303 = vunpack.c.l.b16 %v232
    %v304 = vunpack.c.l.b16 %v233
    %v305 = vunpack.c.l.b16 %v234
    %v306 = vunpack.c.l.b16 %v235
    %v307 = vunpack.c.l.b16 %v236
    %v308 = vunpack.c.l.b16 %v237
    %v309 = vunpack.c.l.b16 %v238
    %v310 = vunpack.c.l.b16 %v239
    %v311 = vunpack.c.l.b16 %v240
    %v312 = vunpack.c.l.b16 %v241
    %v313 = vunpack.c.l.b16 %v242
    %v314 = vunpack.c.l.b16 %v243
    %v315 = vunpack.c.l.b16 %v244
    %v316 = vunpack.c.l.b16 %v245
    %v317 = vunpack.c.l.b16 %v246
    %v318 = vunpack.c.l.b16 %v247
    %v319 = vunpack.c.l.b16 %v248
    %v320 = vunpack.c.l.b16 %v249
    %v321 = vunpack.c.l.b16 %v250
    %v322 = vunpack.c.l.b16 %v251
    %v323 = vunpack.c.l.b16 %v252
    %v324 = vunpack.c.l.b16 %v253
    %v325 = vunpack.c.l.b16 %v254
    %v326 = vunpack.c.l.b16 %v255
    %v327 = vunpack.c.l.b16 %v256
    %v328 = vunpack.c.l.b16 %v257
    %v329 = vunpack.c.l.b16 %v258
    %v330 = vunpack.c.l.b16 %v259
    %v331 = vunpack.c.l.b16 %v260
    %v332 = vunpack.c.l.b16 %v261
    %v333 = vunpack.c.l.b16 %v262
    %v334 = vunpack.c.l.b16 %v263
    %v335 = vpack.c.b16 %v304, %v303
    %v336 = vpack.c.b16 %v306, %v305
    %v337 = vpack.c.b16 %v308, %v307
    %v338 = vpack.c.b16 %v310, %v309
    %v339 = vpack.c.b16 %v312, %v311
    %v340 = vpack.c.b16 %v314, %v313
    %v341 = vpack.c.b16 %v316, %v315
    %v342 = vpack.c.b16 %v318, %v317
    %v343 = vpack.c.b16 %v320, %v319
    %v344 = vpack.c.b16 %v322, %v321
    %v345 = vpack.c.b16 %v324, %v323
    %v346 = vpack.c.b16 %v326, %v325
    %v347 = vpack.c.b16 %v328, %v327
    %v348 = vpack.c.b16 %v330, %v329
    %v349 = vpack.c.b16 %v332, %v331
    %v350 = vpack.c.b16 %v334, %v333
    %367 = vmatprep.subr.bf16.mxu0 0
    %368 = vmatpush1.bf16.msra.mxu0 %v342
    %369 = vmatprep.subr.bf16.mxu0 0
    %370 = vmatpush1.bf16.msra.mxu0 %v341
    %371 = vmatprep.subr.bf16.mxu0 0
    %372 = vmatpush1.bf16.msra.mxu0 %v340
    %373 = vmatprep.subr.bf16.mxu0 0
    %374 = vmatpush1.bf16.msra.mxu0 %v339
    %375 = vmatprep.subr.bf16.mxu0 0
    %376 = vmatpush1.bf16.msra.mxu0 %v338
    %377 = vmatprep.subr.bf16.mxu0 0
    %378 = vmatpush1.bf16.msra.mxu0 %v337
    %379 = vmatprep.subr.bf16.mxu0 0
    %380 = vmatpush1.bf16.msra.mxu0 %v336
    %381 = vmatprep.subr.bf16.mxu0 0
    %382 = vmatpush1.bf16.msra.mxu0 %v335
    %383 = vmatprep.subr.bf16.mxu0 0
    %384 = vmatpush2.bf16.msra.mxu0 %v350
    %385 = vmatprep.subr.bf16.mxu0 0
    %386 = vmatpush2.bf16.msra.mxu0 %v349
    %387 = vmatprep.subr.bf16.mxu0 0
    %388 = vmatpush2.bf16.msra.mxu0 %v348
    %389 = vmatprep.subr.bf16.mxu0 0
    %390 = vmatpush2.bf16.msra.mxu0 %v347
    %391 = vmatprep.subr.bf16.mxu0 0
    %392 = vmatpush2.bf16.msra.mxu0 %v346
    %393 = vmatprep.subr.bf16.mxu0 0
    %394 = vmatpush2.bf16.msra.mxu0 %v345
    %395 = vmatprep.subr.bf16.mxu0 0
    %396 = vmatpush2.bf16.msra.mxu0 %v344
    %397 = vmatprep.subr.bf16.mxu0 0
    %398 = vmatpush2.bf16.msra.mxu0 %v343
    %399 = vmatprep.mubr.bf16.mxu0 %v231
    %400 = vmatmul.mubr.bf16.gmra.mxu0 %v230
    %v401 = vpop.f32.mrf.mxu0
    %v402 = vadd.f32 %v269, %v401
    %v403 = vpop.f32.mrf.mxu0
    %v404 = vpop.f32.mrf.mxu0
    %v405 = vpop.f32.mrf.mxu0
    %406 = vdwg.mxu0
    %v407 = vmax.f32 %v402, 0.0
    %v408 = vpack.c.bf16 %v407, %v407
    %v409 = vld [vmem:[#allocation7] sm:$0xf]
    %v410 = vld [vmem:[#allocation7 + $0x4] sm:$0xf]
    %v411 = vld [vmem:[#allocation7 + $0x8] sm:$0xf]
    %v412 = vld [vmem:[#allocation7 + $0xc] sm:$0xf]
    %v413 = vld [vmem:[#allocation7 + $0x10] sm:$0xf]
    %v414 = vld [vmem:[#allocation7 + $0x14] sm:$0xf]
    %v415 = vld [vmem:[#allocation7 + $0x18] sm:$0xf]
    %v416 = vld [vmem:[#allocation7 + $0x1c] sm:$0xf]
    %v417 = vld [vmem:[#allocation7 + $0x20] sm:$0xf]
    %v418 = vld [vmem:[#allocation7 + $0x24] sm:$0xf]
    %v419 = vld [vmem:[#allocation7 + $0x28] sm:$0xf]
    %v420 = vld [vmem:[#allocation7 + $0x2c] sm:$0xf]
    %v421 = vld [vmem:[#allocation7 + $0x30] sm:$0xf]
    %v422 = vld [vmem:[#allocation7 + $0x34] sm:$0xf]
    %v423 = vld [vmem:[#allocation7 + $0x38] sm:$0xf]
    %v424 = vld [vmem:[#allocation7 + $0x3c] sm:$0xf]
    %v425 = vld [vmem:[%s6] sm:$0x1]
    %v427 = vlaneseq
    %v428 = vshrl.u32 %v427, 7
    %v429 = vsub.s32 0, %v428
    %v430 = vrot.slane %v425, %v429
    %v448 = vunpack.c.l.b16 %v409
    %v449 = vunpack.c.l.b16 %v410
    %v450 = vunpack.c.l.b16 %v411
    %v451 = vunpack.c.l.b16 %v412
    %v452 = vunpack.c.l.b16 %v413
    %v453 = vunpack.c.l.b16 %v414
    %v454 = vunpack.c.l.b16 %v415
    %v455 = vunpack.c.l.b16 %v416
    %v456 = vunpack.c.l.b16 %v417
    %v457 = vunpack.c.l.b16 %v418
    %v458 = vunpack.c.l.b16 %v419
    %v459 = vunpack.c.l.b16 %v420
    %v460 = vunpack.c.l.b16 %v421
    %v461 = vunpack.c.l.b16 %v422
    %v462 = vunpack.c.l.b16 %v423
    %v463 = vunpack.c.l.b16 %v424
    %v464 = vpack.c.b16 %v449, %v448
    %v465 = vpack.c.b16 %v451, %v450
    %v466 = vpack.c.b16 %v453, %v452
    %v467 = vpack.c.b16 %v455, %v454
    %v468 = vpack.c.b16 %v457, %v456
    %v469 = vpack.c.b16 %v459, %v458
    %v470 = vpack.c.b16 %v461, %v460
    %v471 = vpack.c.b16 %v463, %v462
    %480 = vmatprep.subr.bf16.mxu0 0
    %481 = vmatpush1.bf16.msra.mxu0 %v471
    %482 = vmatprep.subr.bf16.mxu0 0
    %483 = vmatpush1.bf16.msra.mxu0 %v470
    %484 = vmatprep.subr.bf16.mxu0 0
    %485 = vmatpush1.bf16.msra.mxu0 %v469
    %486 = vmatprep.subr.bf16.mxu0 0
    %487 = vmatpush1.bf16.msra.mxu0 %v468
    %488 = vmatprep.subr.bf16.mxu0 0
    %489 = vmatpush1.bf16.msra.mxu0 %v467
    %490 = vmatprep.subr.bf16.mxu0 0
    %491 = vmatpush1.bf16.msra.mxu0 %v466
    %492 = vmatprep.subr.bf16.mxu0 0
    %493 = vmatpush1.bf16.msra.mxu0 %v465
    %494 = vmatprep.subr.bf16.mxu0 0
    %495 = vmatpush1.bf16.msra.mxu0 %v464
    %496 = vmatprep.subr.bf16.mxu0 0
    %497 = vmatpush2.bf16.msra.mxu0 0
    %498 = vmatprep.subr.bf16.mxu0 0
    %499 = vmatpush2.bf16.msra.mxu0 0
    %500 = vmatprep.subr.bf16.mxu0 0
    %501 = vmatpush2.bf16.msra.mxu0 0
    %502 = vmatprep.subr.bf16.mxu0 0
    %503 = vmatpush2.bf16.msra.mxu0 0
    %504 = vmatprep.subr.bf16.mxu0 0
    %505 = vmatpush2.bf16.msra.mxu0 0
    %506 = vmatprep.subr.bf16.mxu0 0
    %507 = vmatpush2.bf16.msra.mxu0 0
    %508 = vmatprep.subr.bf16.mxu0 0
    %509 = vmatpush2.bf16.msra.mxu0 0
    %510 = vmatprep.subr.bf16.mxu0 0
    %511 = vmatpush2.bf16.msra.mxu0 0
    %512 = vmatprep.mubr.bf16.mxu0 0
    %513 = vmatmul.mubr.bf16.gmra.mxu0 %v408
    %v514 = vpop.f32.mrf.mxu0
    %v515 = vadd.f32 %v430, %v514
    %v516 = vpop.f32.mrf.mxu0
    %v517 = vpop.f32.mrf.mxu0
    %v518 = vpop.f32.mrf.mxu0
    %519 = vdwg.mxu0
    %520 = vst [vmem:[#allocation8] sm:$0xff] %v515
    // Predicated region
    $region42: #{tpu_custom_call.1} parent=1 // pred_check
      _
    $region43: #{tpu_custom_call.1} parent=1 // pred_check_branch
      %522 = sbr.rel (0) target = $region45
    $region44: #{tpu_custom_call.1} parent=1 // pred_region
      %s524 = ssub.s32 128, 128
      %525 = vsyncadd [#allocation4], %s524
      %s527 = sshll.u32 [#allocation8], 4
      %s528 = int_to_ptr.vmem [resolvable:$true] %s527
      %530 = dma.vmem_to_hbm [thread:$0]  %s528, 128, %s7, [#allocation4]
    $region45: #{tpu_custom_call.1} parent=1 // pred_fallthru
      _
    // Predicated region
    $region46: #{tpu_custom_call.1} parent=1 // pred_check
      _
    $region47: #{tpu_custom_call.1} parent=1 // pred_check_branch
      %532 = sbr.rel (0) target = $region49
    $region48: #{tpu_custom_call.1} parent=1 // pred_region
      %533 = dma.done [#allocation4], 128
    $region49: #{tpu_custom_call.1} parent=1 // pred_fallthru
      _
    %534 = vsyncpa [#allocation3], 1
    %535 = vsyncpa [#allocation6], 1
    %536 = vsyncpa [#allocation4], 1

</llo_original>
